<compile_context>
chip_gen: v5e
topology: v5e:2x2
jax: 0.10.0
libtpu: 0.0.40
codegen_flags: <defaults>
</compile_context>

<pallas_src>
import math
import functools

import jax
import jax.numpy as jnp
from jax.experimental import pallas as pl
from jax.experimental.pallas import tpu as pltpu


MASK_VALUE = -0.7 * float(jnp.finfo(jnp.float32).max)


def _pick_tile(dim, target, align):
    """Largest tile <= target that divides dim and is a multiple of align,
    falling back to the full dim (which always satisfies the layout rule)."""
    if dim <= target:
        return dim
    t = (target // align) * align
    while t >= align:
        if dim % t == 0:
            return t
        t -= align
    return dim


# ----------------------------------------------------------------------------
# Tiled linear kernel: out = x @ W.T   (x: [M, K], W: [N, K])
# ----------------------------------------------------------------------------
def _linear_kernel(x_ref, w_ref, o_ref, acc_ref, *, mxu_dtype):
    @pl.when(pl.program_id(2) == 0)
    def _():
        acc_ref[...] = jnp.zeros_like(acc_ref)

    # Contract x[:, k] with w[:, k]  (no in-kernel .T -> MXU-native layout).
    acc_ref[...] += jax.lax.dot_general(
        x_ref[...].astype(mxu_dtype),
        w_ref[...].astype(mxu_dtype),
        dimension_numbers=(((1,), (1,)), ((), ())),
        preferred_element_type=jnp.float32,
    )

    @pl.when(pl.program_id(2) == pl.num_programs(2) - 1)
    def _():
        o_ref[...] = acc_ref[...].astype(o_ref.dtype)


def pallas_linear(x, w, *, mxu_dtype=jnp.bfloat16,
                  tm_target=256, tn_target=256, tk_target=512):
    M, K = x.shape
    N, K2 = w.shape
    assert K == K2
    tm = _pick_tile(M, tm_target, 8)
    tn = _pick_tile(N, tn_target, 128)
    tk = _pick_tile(K, tk_target, 128)
    grid = (M // tm, N // tn, K // tk)

    itemsize = int(jnp.dtype(x.dtype).itemsize)
    cost = pl.CostEstimate(
        flops=2 * M * N * K,
        transcendentals=0,
        bytes_accessed=itemsize * (M * K + N * K + M * N),
    )
    return pl.pallas_call(
        functools.partial(_linear_kernel, mxu_dtype=mxu_dtype),
        out_shape=jax.ShapeDtypeStruct((M, N), x.dtype),
        grid=grid,
        in_specs=[
            pl.BlockSpec((tm, tk), lambda i, j, k: (i, k)),
            pl.BlockSpec((tn, tk), lambda i, j, k: (j, k)),
        ],
        out_specs=pl.BlockSpec((tm, tn), lambda i, j, k: (i, j)),
        scratch_shapes=[pltpu.VMEM((tm, tn), jnp.float32)],
        compiler_params=pltpu.CompilerParams(
            dimension_semantics=("parallel", "parallel", "arbitrary"),
            vmem_limit_bytes=32 * 1024 * 1024,
        ),
        cost_estimate=cost,
    )(x, w)


# ----------------------------------------------------------------------------
# RoPE helpers
# ----------------------------------------------------------------------------
def _rotate_half(x):
    d = x.shape[-1]
    x1 = x[..., : d // 2]
    x2 = x[..., d // 2:]
    return jnp.concatenate([-x2, x1], axis=-1)


def _apply_rope(x, cos, sin):
    """x * cos + rotate_half(x) * sin, done per-tile inside the kernel."""
    d = x.shape[-1]
    half = d // 2
    if d % 128 == 0:
        # Lane-aligned head_dim: use the XLU roll slot + a sign select instead of
        # slice+concat (which crosses the (8,128) lane tiling).
        col = jax.lax.broadcasted_iota(jnp.int32, x.shape, x.ndim - 1)
        sin_signed = jnp.where(col < half, -sin, sin)
        return x * cos + pltpu.roll(x, shift=half, axis=-1) * sin_signed
    # Small / unaligned head_dim (e.g. the toy config): plain slice + concat.
    return x * cos + _rotate_half(x) * sin


# ----------------------------------------------------------------------------
# Flash-style attention kernel.
# grid = (B, NH, S//TQ, S//TK); kv axis innermost ("arbitrary").
# Causal mask is generated in-kernel; online softmax in f32; bf16 MXU operands.
# ----------------------------------------------------------------------------
def _flash_attention_kernel(q_ref, k_ref, v_ref, cq_ref, sq_ref, ck_ref, sk_ref,
                            o_ref, m_sc, l_sc, acc_sc,
                            *, scale, tq, tk, mxu_dtype):
    qi = pl.program_id(2)
    ki = pl.program_id(3)
    nk = pl.num_programs(3)

    @pl.when(ki == 0)
    def _():
        m_sc[...] = jnp.full_like(m_sc, MASK_VALUE)
        l_sc[...] = jnp.zeros_like(l_sc)
        acc_sc[...] = jnp.zeros_like(acc_sc)

    # Skip kv tiles that are entirely above the causal diagonal for this q tile.
    @pl.when(ki * tk <= qi * tq + (tq - 1))
    def _():
        q = _apply_rope(q_ref[...].astype(jnp.float32), cq_ref[...], sq_ref[...])
        k = _apply_rope(k_ref[...].astype(jnp.float32), ck_ref[...], sk_ref[...])
        q = q * scale  # fold 1/sqrt(head_dim) into q (f32, before MXU cast)

        s = jax.lax.dot_general(                      # (TQ, TK) = q @ k^T
            q.astype(mxu_dtype), k.astype(mxu_dtype),
            dimension_numbers=(((1,), (1,)), ((), ())),
            preferred_element_type=jnp.float32,
        )

        # Causal mask from index arithmetic (no HBM mask tensor).
        row = qi * tq + jax.lax.broadcasted_iota(jnp.int32, (tq, tk), 0)
        col = ki * tk + jax.lax.broadcasted_iota(jnp.int32, (tq, tk), 1)
        s = jnp.where(row >= col, s, MASK_VALUE)

        # Online softmax update (all f32).
        m_prev = m_sc[...]
        m_new = jnp.maximum(m_prev, jnp.max(s, axis=-1, keepdims=True))
        alpha = jnp.exp(m_prev - m_new)
        p = jnp.exp(s - m_new)
        l_sc[...] = alpha * l_sc[...] + jnp.sum(p, axis=-1, keepdims=True)
        acc_sc[...] = alpha * acc_sc[...] + jax.lax.dot_general(
            p.astype(mxu_dtype), v_ref[...].astype(mxu_dtype),
            dimension_numbers=(((1,), (0,)), ((), ())),
            preferred_element_type=jnp.float32,
        )
        m_sc[...] = m_new

    @pl.when(ki == nk - 1)
    def _():
        inv_l = pl.reciprocal(l_sc[...], approx=True)
        o_ref[...] = (acc_sc[...] * inv_l).astype(o_ref.dtype)


def pallas_flash_attention(q, k, v, cos, sin, *, mxu_dtype=jnp.bfloat16,
                           tq_target=256, tk_target=256):
    """q: [B,NH,S,D], k/v: [B,NKV,S,D], cos/sin: [S,D] -> [B,NH,S,D]."""
    B, NH, S, D = q.shape
    NKV = k.shape[1]
    G = NH // NKV  # repeat_kv folded into the k/v index_map

    TQ = _pick_tile(S, tq_target, 8)
    TK = _pick_tile(S, tk_target, 8)
    nq, nk = S // TQ, S // TK

    itemsize = int(jnp.dtype(q.dtype).itemsize)
    cost = pl.CostEstimate(
        flops=4 * B * NH * S * S * D,
        transcendentals=B * NH * S * S,
        bytes_accessed=itemsize * (2 * B * NH * S * D + 2 * B * NKV * S * D),
    )

    kernel = functools.partial(
        _flash_attention_kernel,
        scale=1.0 / math.sqrt(D), tq=TQ, tk=TK, mxu_dtype=mxu_dtype,
    )
    return pl.pallas_call(
        kernel,
        out_shape=jax.ShapeDtypeStruct((B, NH, S, D), q.dtype),
        grid=(B, NH, nq, nk),
        in_specs=[
            pl.BlockSpec((None, None, TQ, D), lambda b, h, i, j: (b, h, i, 0)),       # q
            pl.BlockSpec((None, None, TK, D), lambda b, h, i, j: (b, h // G, j, 0)),  # k
            pl.BlockSpec((None, None, TK, D), lambda b, h, i, j: (b, h // G, j, 0)),  # v
            pl.BlockSpec((TQ, D), lambda b, h, i, j: (i, 0)),                         # cos (q rows)
            pl.BlockSpec((TQ, D), lambda b, h, i, j: (i, 0)),                         # sin (q rows)
            pl.BlockSpec((TK, D), lambda b, h, i, j: (j, 0)),                         # cos (k rows)
            pl.BlockSpec((TK, D), lambda b, h, i, j: (j, 0)),                         # sin (k rows)
        ],
        out_specs=pl.BlockSpec((None, None, TQ, D), lambda b, h, i, j: (b, h, i, 0)),
        scratch_shapes=[
            pltpu.VMEM((TQ, 1), jnp.float32),   # running max
            pltpu.VMEM((TQ, 1), jnp.float32),   # running sum
            pltpu.VMEM((TQ, D), jnp.float32),   # output accumulator
        ],
        compiler_params=pltpu.CompilerParams(
            dimension_semantics=("parallel", "parallel", "parallel", "arbitrary"),
            vmem_limit_bytes=32 * 1024 * 1024,
        ),
        cost_estimate=cost,
    )(q, k, v, cos, sin, cos, sin)


# ----------------------------------------------------------------------------
# Glue (plain JAX): rotary tables, reshapes, module wrapper.
# ----------------------------------------------------------------------------
def rotary_cos_sin(positions, dim, base=10000.0, dtype=jnp.float32):
    # positions: (S,) int; returns cos, sin of shape (S, dim)
    inv_freq = 1.0 / (base ** (jnp.arange(0, dim, 2, dtype=jnp.float32) / dim))
    freqs = positions.astype(jnp.float32)[:, None] * inv_freq[None, :]
    emb = jnp.concatenate([freqs, freqs], axis=-1)
    return jnp.cos(emb).astype(dtype), jnp.sin(emb).astype(dtype)


class QuantLlamaAttentionPallas:
    def __init__(self, hidden_size, num_heads, num_key_value_heads, key,
                 rope_base=10000.0, dtype=jnp.float32, mxu_dtype=jnp.bfloat16):
        self.hidden_size = hidden_size
        self.num_heads = num_heads
        self.head_dim = hidden_size // num_heads
        self.num_key_value_heads = num_key_value_heads
        self.num_key_value_groups = num_heads // num_key_value_heads
        self.rope_base = rope_base
        self.mxu_dtype = mxu_dtype
        if self.head_dim * num_heads != hidden_size:
            raise ValueError("hidden_size must be divisible by num_heads")

        kq, kk, kv, ko = jax.random.split(key, 4)
        kv_dim = num_key_value_heads * self.head_dim
        self.kv_dim = kv_dim
        s = 0.02
        self.w_q = (s * jax.random.normal(kq, (hidden_size, hidden_size))).astype(dtype)
        self.w_k = (s * jax.random.normal(kk, (kv_dim, hidden_size))).astype(dtype)
        self.w_v = (s * jax.random.normal(kv, (kv_dim, hidden_size))).astype(dtype)
        self.w_o = (s * jax.random.normal(ko, (hidden_size, hidden_size))).astype(dtype)
        # Fused QKV weight: one GEMM reads the activations from HBM once.
        self.w_qkv = jnp.concatenate([self.w_q, self.w_k, self.w_v], axis=0)

    def __call__(self, hidden_states, attention_mask=None, position_ids=None):
        B, S, H = hidden_states.shape
        NH, NKV, D = self.num_heads, self.num_key_value_heads, self.head_dim
        KVD = self.kv_dim
        assert attention_mask is None, "causal mask is generated in-kernel"

        if position_ids is None:
            position_ids = jnp.arange(S, dtype=jnp.int32)
        cos, sin = rotary_cos_sin(position_ids, D, self.rope_base,
                                  jnp.float32)  # (S, D)

        # Fused q/k/v projection.
        x2d = hidden_states.reshape(B * S, H)
        qkv = pallas_linear(x2d, self.w_qkv, mxu_dtype=self.mxu_dtype)
        q = qkv[:, :H].reshape(B, S, NH, D).transpose(0, 2, 1, 3)
        k = qkv[:, H:H + KVD].reshape(B, S, NKV, D).transpose(0, 2, 1, 3)
        v = qkv[:, H + KVD:].reshape(B, S, NKV, D).transpose(0, 2, 1, 3)

        attn = pallas_flash_attention(q, k, v, cos, sin,
                                      mxu_dtype=self.mxu_dtype)  # (B,NH,S,D)
        attn = attn.transpose(0, 2, 1, 3).reshape(B * S, H)
        out = pallas_linear(attn, self.w_o, mxu_dtype=self.mxu_dtype)
        return out.reshape(B, S, H)


# ----------------------------------------------------------------------------
# Pure-JAX reference mirroring the PyTorch math (f32, additive mask + clamp).
# ----------------------------------------------------------------------------
def reference_forward(mod, hidden_states):
    B, S, H = hidden_states.shape
    NH, NKV, D = mod.num_heads, mod.num_key_value_heads, mod.head_dim
    G = mod.num_key_value_groups

    i = jnp.arange(S)[:, None]
    j = jnp.arange(S)[None, :]
    neg = float(jnp.finfo(jnp.float32).min)
    mask = jnp.where(j <= i, 0.0, neg)[None, None]  # (1,1,S,S)

    q = (hidden_states @ mod.w_q.T).reshape(B, S, NH, D).transpose(0, 2, 1, 3)
    k = (hidden_states @ mod.w_k.T).reshape(B, S, NKV, D).transpose(0, 2, 1, 3)
    v = (hidden_states @ mod.w_v.T).reshape(B, S, NKV, D).transpose(0, 2, 1, 3)

    cos, sin = rotary_cos_sin(jnp.arange(S), D, mod.rope_base)
    cos_, sin_ = cos[None, None], sin[None, None]
    q = q * cos_ + _rotate_half(q) * sin_
    k = k * cos_ + _rotate_half(k) * sin_

    k = jnp.repeat(k, G, axis=1)
    v = jnp.repeat(v, G, axis=1)

    scores = jnp.einsum("bhqd,bhkd->bhqk", q, k) / math.sqrt(D)
    scores = scores + mask
    scores = jnp.maximum(scores, neg)
    p = jax.nn.softmax(scores.astype(jnp.float32), axis=-1).astype(q.dtype)
    o = jnp.einsum("bhqk,bhkd->bhqd", p, v)
    o = o.transpose(0, 2, 1, 3).reshape(B, S, H)
    return o @ mod.w_o.T


if __name__ == "__main__":
    # Small LlamaConfig-like setup: hidden=32, heads=4 (head_dim=8), kv_heads=2.
    B, S, H = 2, 8, 32
    NH, NKV = 4, 2

    key = jax.random.PRNGKey(0)
    k_in, k_w = jax.random.split(key)
    hidden_states = jax.random.normal(k_in, (B, S, H), dtype=jnp.float32)

    mod = QuantLlamaAttentionPallas(H, NH, NKV, key=k_w)

    out = jax.block_until_ready(mod(hidden_states))
    ref = reference_forward(mod, hidden_states)

    assert out.shape == (B, S, H)
    assert jnp.allclose(out, ref, rtol=5e-2, atol=5e-3), (
        f"max abs diff {float(jnp.max(jnp.abs(out - ref)))}"
    )

    print("KERNEL_OK")
</pallas_src>

<mosaic_0001>
module attributes {stable_mosaic.version = 11 : i64} {
  func.func @_linear_kernel(%arg0: i32, %arg1: i32, %arg2: i32, %arg3: memref<16x32xf32, #tpu.memory_space<vmem>>, %arg4: memref<64x32xf32, #tpu.memory_space<vmem>>, %arg5: memref<16x64xf32, #tpu.memory_space<vmem>>, %arg6: memref<16x64xf32, #tpu.memory_space<vmem>>) attributes {dimension_semantics = [#tpu.dimension_semantics<parallel>, #tpu.dimension_semantics<parallel>, #tpu.dimension_semantics<arbitrary>], iteration_bounds = array<i64: 1, 1, 1>, scalar_prefetch = 0 : i64, scratch_operands = 1 : i64, tpu.core_type = #tpu.core_type<tc>, window_params = [{transform_indices = @transform_0, window_bounds = array<i64: 16, 32>}, {transform_indices = @transform_1, window_bounds = array<i64: 64, 32>}, {transform_indices = @transform_2, window_bounds = array<i64: 16, 64>}]} {
    %c0_i32 = arith.constant 0 : i32
    %0 = arith.cmpi eq, %arg2, %c0_i32 : i32
    %1 = arith.extui %0 : i1 to i32
    %c0_i32_0 = arith.constant 0 : i32
    %2 = arith.cmpi ne, %1, %c0_i32_0 : i32
    scf.if %2 {
      %cst_10 = arith.constant 0.000000e+00 : f32
      %14 = vector.broadcast %cst_10 : f32 to vector<16x64xf32>
      %c0_11 = arith.constant 0 : index
      %c0_12 = arith.constant 0 : index
      %15 = vector.load %arg6[%c0_11, %c0_12] : memref<16x64xf32, #tpu.memory_space<vmem>>, vector<16x64xf32>
      tpu.vector_store %arg6[%c0_11, %c0_12], %14 {strides = array<i32>} : memref<16x64xf32, #tpu.memory_space<vmem>>, vector<16x64xf32>,
    } else {
    }
    %c0 = arith.constant 0 : index
    %c0_1 = arith.constant 0 : index
    %3 = vector.load %arg6[%c0, %c0_1] : memref<16x64xf32, #tpu.memory_space<vmem>>, vector<16x64xf32>
    %c0_2 = arith.constant 0 : index
    %c0_3 = arith.constant 0 : index
    %4 = vector.load %arg3[%c0_2, %c0_3] : memref<16x32xf32, #tpu.memory_space<vmem>>, vector<16x32xf32>
    %5 = arith.truncf %4 : vector<16x32xf32> to vector<16x32xbf16>
    %c0_4 = arith.constant 0 : index
    %c0_5 = arith.constant 0 : index
    %6 = vector.load %arg4[%c0_4, %c0_5] : memref<64x32xf32, #tpu.memory_space<vmem>>, vector<64x32xf32>
    %7 = arith.truncf %6 : vector<64x32xf32> to vector<64x32xbf16>
    %cst = arith.constant dense<0.000000e+00> : vector<16x64xf32>
    %8 = tpu.matmul %5, %7, %cst {dimension_numbers = #tpu.dot_dimension_numbers<[1], [1], [0], [0], [0, 0, 1, 0], [], []>} : vector<16x32xbf16>, vector<64x32xbf16>, vector<16x64xf32> -> vector<16x64xf32>
    %9 = arith.addf %3, %8 : vector<16x64xf32>
    %c0_6 = arith.constant 0 : index
    %c0_7 = arith.constant 0 : index
    %10 = vector.load %arg6[%c0_6, %c0_7] : memref<16x64xf32, #tpu.memory_space<vmem>>, vector<16x64xf32>
    tpu.vector_store %arg6[%c0_6, %c0_7], %9 {strides = array<i32>} : memref<16x64xf32, #tpu.memory_space<vmem>>, vector<16x64xf32>,
    %c0_i32_8 = arith.constant 0 : i32
    %11 = arith.cmpi eq, %arg2, %c0_i32_8 : i32
    %12 = arith.extui %11 : i1 to i32
    %c0_i32_9 = arith.constant 0 : i32
    %13 = arith.cmpi ne, %12, %c0_i32_9 : i32
    scf.if %13 {
      %c0_10 = arith.constant 0 : index
      %c0_11 = arith.constant 0 : index
      %14 = vector.load %arg6[%c0_10, %c0_11] : memref<16x64xf32, #tpu.memory_space<vmem>>, vector<16x64xf32>
      %c0_12 = arith.constant 0 : index
      %c0_13 = arith.constant 0 : index
      %15 = vector.load %arg5[%c0_12, %c0_13] : memref<16x64xf32, #tpu.memory_space<vmem>>, vector<16x64xf32>
      tpu.vector_store %arg5[%c0_12, %c0_13], %14 {strides = array<i32>} : memref<16x64xf32, #tpu.memory_space<vmem>>, vector<16x64xf32>,
    } else {
    }
    return
  }
  func.func @transform_0(%arg0: i32, %arg1: i32, %arg2: i32) -> (i32, i32) {
    %c0_i32 = arith.constant 0 : i32
    return %arg0, %arg2 : i32, i32
  }
  func.func @transform_1(%arg0: i32, %arg1: i32, %arg2: i32) -> (i32, i32) {
    %c0_i32 = arith.constant 0 : i32
    return %arg1, %arg2 : i32, i32
  }
  func.func @transform_2(%arg0: i32, %arg1: i32, %arg2: i32) -> (i32, i32) {
    %c0_i32 = arith.constant 0 : i32
    return %arg0, %arg1 : i32, i32
  }
}

</mosaic_0001>

<llo_original>
// kernel: tpu_custom_call.1
$region0: #{tpu_custom_call.1}
  #allocation0 [shape = 'u32[]', space=smem, size = 0x4, offset = 0x4, fixed_abs, tag = 'smem constant byte address 0x4 - core index']
  #allocation1 [shape = 'u32[72,128]{1,0:T(1,128)}', space=vmem, size = 0x9000, scoped, tag = 'internal scratch']
  #allocation2 [shape = 'f32[16,64]{1,0:T(8,128)}', space=vmem, size = 0x2000, scoped, tag = 'scratch operand']
  %s0 = inlined_call_operand.vmem [shape: f32[16,32], index: 0, kind: input, shape index: {}]
  %s1 = inlined_call_operand.vmem [shape: f32[64,32], index: 1, kind: input, shape index: {}]
  %s2 = inlined_call_operand.hbm [shape: f32[16,64], index: 2, kind: output, shape index: {}]
  %s3 = sld [smem:[#allocation0]]
  $region26: #{tpu_custom_call.1} parent=0
    _
  %s5 = ssub.s32 1, %s3
  %s6 = scalar_select 0, %s5, %s3
  $region1: #{tpu_custom_call.1} parent=0
    #allocation3 [shape = 'u8[8192]{0}', space=vmem, size = 0x2000, scoped, tag = 'output window, operand 0, single buffered']
    #allocation4 [shape = 's32[1]{0}', space=sflag, size = 0x4, scoped, tag = 'scoped memory for tpu_custom_call.1']
    %7 = vsyncpa [#allocation4], 0
    // Predicated region
    $region2: #{tpu_custom_call.1} parent=1 // pred_check
      _
    $region3: #{tpu_custom_call.1} parent=1 // pred_check_branch
      %9 = sbr.rel (0) target = $region5
    $region4: #{tpu_custom_call.1} parent=1 // pred_region
      _
    $region5: #{tpu_custom_call.1} parent=1 // pred_fallthru
      _
    // Predicated region
    $region6: #{tpu_custom_call.1} parent=1 // pred_check
      _
    $region7: #{tpu_custom_call.1} parent=1 // pred_check_branch
      %11 = sbr.rel (0) target = $region9
    $region8: #{tpu_custom_call.1} parent=1 // pred_region
      _
    $region9: #{tpu_custom_call.1} parent=1 // pred_fallthru
      _
    %p13 = scmp.eq.s32.totalorder 0, 0
    // Predicated region
    $region10: #{tpu_custom_call.1} parent=1 // pred_check
      %p14 = pneg %p13
    $region11: #{tpu_custom_call.1} parent=1 // pred_check_branch
      %16 = sbr.rel (%p14) target = $region13
    $region12: #{tpu_custom_call.1} parent=1 // pred_region
      %vm17 = vcmask 523264
      %18 = vst.msk [vmem:[#allocation2] sm:$0xff] %vm17, 0.0
      %19 = vst.msk [vmem:[#allocation2 + $0x8] sm:$0xff] %vm17, 0.0
    $region13: #{tpu_custom_call.1} parent=1 // pred_fallthru
      _
    %v20 = vld [vmem:[#allocation2] sm:$0xff]
    %v21 = vld [vmem:[#allocation2 + $0x8] sm:$0xff]
    %v22 = vld [vmem:[%s0] sm:$0xff]
    %v23 = vld [vmem:[%s0 + $0x8] sm:$0xff]
    %v24 = vpack.c.bf16 %v23, %v22
    %v25 = vld [vmem:[%s1] sm:$0xff]
    %v26 = vld [vmem:[%s1 + $0x8] sm:$0xff]
    %v27 = vld [vmem:[%s1 + $0x10] sm:$0xff]
    %v28 = vld [vmem:[%s1 + $0x18] sm:$0xff]
    %v29 = vld [vmem:[%s1 + $0x20] sm:$0xff]
    %v30 = vld [vmem:[%s1 + $0x28] sm:$0xff]
    %v31 = vld [vmem:[%s1 + $0x30] sm:$0xff]
    %v32 = vld [vmem:[%s1 + $0x38] sm:$0xff]
    %v33 = vpack.c.bf16 %v26, %v25
    %v34 = vpack.c.bf16 %v28, %v27
    %v35 = vpack.c.bf16 %v30, %v29
    %v36 = vpack.c.bf16 %v32, %v31
    %vm37 = vcmask 261120
    %v39 = vsel %vm37, %v24, 0
    %v42 = vsel %vm37, %v33, 0
    %v45 = vsel %vm37, %v34, 0
    %v48 = vsel %vm37, %v35, 0
    %v51 = vsel %vm37, %v36, 0
    %53 = vmatpush.bf16.xpose.msra.mxu0 0
    %54 = vmatpush.bf16.xpose.msra.mxu0 0
    %55 = vmatpush.bf16.xpose.msra.mxu0 0
    %56 = vmatpush.bf16.xpose.msra.mxu0 0
    %57 = vmatpush.bf16.xpose.msra.mxu0 %v51
    %58 = vmatpush.bf16.xpose.msra.mxu0 %v48
    %59 = vmatpush.bf16.xpose.msra.mxu0 %v45
    %60 = vmatpush.bf16.xpose.msra.mxu0 %v42
    %61 = vmatmul.bf16.gmra.mxu0 %v39
    %v62 = vpop.f32.mrf.mxu0
    %v63 = vadd.f32 0.0, %v62
    %v64 = vpop.f32.mrf.mxu0
    %v65 = vadd.f32 0.0, %v64
    %66 = vdwg.mxu0
    %v67 = vadd.f32 %v20, %v63
    %v68 = vadd.f32 %v21, %v65
    %vm69 = vcmask 523264
    %70 = vst.msk [vmem:[#allocation2] sm:$0xff] %vm69, %v67
    %71 = vst.msk [vmem:[#allocation2 + $0x8] sm:$0xff] %vm69, %v68
    // Predicated region
    $region14: #{tpu_custom_call.1} parent=1 // pred_check
      %p72 = pneg %p13
    $region15: #{tpu_custom_call.1} parent=1 // pred_check_branch
      %74 = sbr.rel (%p72) target = $region17
    $region16: #{tpu_custom_call.1} parent=1 // pred_region
      %v75 = vld [vmem:[#allocation2] sm:$0xff]
      %v76 = vld [vmem:[#allocation2 + $0x8] sm:$0xff]
      %77 = vst.msk [vmem:[#allocation3] sm:$0xff] %vm69, %v75
      %78 = vst.msk [vmem:[#allocation3 + $0x8] sm:$0xff] %vm69, %v76
    $region17: #{tpu_custom_call.1} parent=1 // pred_fallthru
      _
    // Predicated region
    $region18: #{tpu_custom_call.1} parent=1 // pred_check
      _
    $region19: #{tpu_custom_call.1} parent=1 // pred_check_branch
      %80 = sbr.rel (0) target = $region21
    $region20: #{tpu_custom_call.1} parent=1 // pred_region
      %82 = vsyncadd [#allocation4], 0
      %s83 = sshll.u32 [#allocation3], 4
      %s84 = int_to_ptr.vmem [resolvable:$true] %s83
      %s85 = sshll.u32 %s2, 4
      %s86 = int_to_ptr.hbm [resolvable:$true] %s85
      %91 = dma.vmem_to_hbm [thread:$0]  %s84, 256, %s86, [#allocation4], 128, 128, 8
    $region21: #{tpu_custom_call.1} parent=1 // pred_fallthru
      _
    // Predicated region
    $region22: #{tpu_custom_call.1} parent=1 // pred_check
      _
    $region23: #{tpu_custom_call.1} parent=1 // pred_check_branch
      %93 = sbr.rel (0) target = $region25
    $region24: #{tpu_custom_call.1} parent=1 // pred_region
      %95 = dma.done [#allocation4], 256
    $region25: #{tpu_custom_call.1} parent=1 // pred_fallthru
      _
    %96 = vsyncpa [#allocation4], 1

</llo_original>
